<compile_context>
chip_gen: v7x
topology: tpu7x:2x2x1
jax: 0.10.0
libtpu: 0.0.40
codegen_flags: <defaults>
</compile_context>

<pallas_src>
import jax
import jax.numpy as jnp
from jax.experimental import pallas as pl
from jax.experimental.pallas import tpu as pltpu

N_WAVELENGTHS = 16            # stand-in for CM().get('wavelengths').size()[0]
IN_DIM = 2 * N_WAVELENGTHS    # 32
L1, L2, L3 = 128, 512, 64
L3_PAD = 128                  # lane-dense padded layer-3 width (bit-identical)
OUT_DIM = 20

MAX_BATCH_TILE = 2048         # MXU-aligned batch tile cap (multiple of 128/256)


def _mlp_kernel(x_ref,
                w1_ref, b1_ref,
                w2_ref, b2_ref,
                w3_ref, b3_ref,
                w4_ref, b4_ref,
                o_ref):
    # bf16 operands on the MXU, f32 accumulation; bias-add / ReLU stay in f32.
    x = x_ref[...].astype(jnp.bfloat16)                     # (tile_b, IN_DIM)

    h = jnp.dot(x, w1_ref[...], preferred_element_type=jnp.float32) + b1_ref[...]
    h = jnp.maximum(h, 0.0).astype(jnp.bfloat16)

    h = jnp.dot(h, w2_ref[...], preferred_element_type=jnp.float32) + b2_ref[...]
    h = jnp.maximum(h, 0.0).astype(jnp.bfloat16)

    h = jnp.dot(h, w3_ref[...], preferred_element_type=jnp.float32) + b3_ref[...]
    h = jnp.maximum(h, 0.0).astype(jnp.bfloat16)

    out = jnp.dot(h, w4_ref[...], preferred_element_type=jnp.float32) + b4_ref[...]
    o_ref[...] = out.astype(o_ref.dtype)                    # (tile_b, OUT_DIM) f32


def _round_up(x, m):
    return ((x + m - 1) // m) * m


def _choose_batch_tile(B):
    """MXU-aligned batch tile; aim for >=4 grid steps on large batches so the
    parallel grid axis can feed both v7x TensorCores, capped for VMEM."""
    if B <= 128:
        return B                      # single full-extent block (always legal)
    tile = _round_up(pl.cdiv(B, 4), 128)
    return min(MAX_BATCH_TILE, tile)


@jax.jit
def trainable_mlp_forward(x, kparams):
    """x: (B, IN_DIM) f32. kparams: output of prepare_kernel_params()."""
    B = x.shape[0]
    tile_b = _choose_batch_tile(B)
    grid = (pl.cdiv(B, tile_b),)

    # Constant-index, VMEM-resident parameter blocks: never re-DMA'd across the
    # grid, so single-buffer them (no duplicate copy, no revisit bookkeeping).
    def resident(shape):
        return pl.BlockSpec(shape, lambda i: (0, 0), pipeline_mode=pl.Buffered(1))

    out = pl.pallas_call(
        _mlp_kernel,
        out_shape=jax.ShapeDtypeStruct((B, OUT_DIM), jnp.float32),
        grid_spec=pltpu.PrefetchScalarGridSpec(
            num_scalar_prefetch=0,
            grid=grid,
            in_specs=[
                pl.BlockSpec((tile_b, IN_DIM), lambda i: (i, 0)),
                resident((IN_DIM, L1)),     resident((1, L1)),
                resident((L1, L2)),         resident((1, L2)),
                resident((L2, L3_PAD)),     resident((1, L3_PAD)),
                resident((L3_PAD, OUT_DIM)), resident((1, OUT_DIM)),
            ],
            # True 20-wide output (block last dim == full array last dim):
            # contiguous HBM writes, no lane-padding amplification, no wrapper slice.
            out_specs=pl.BlockSpec((tile_b, OUT_DIM), lambda i: (i, 0)),
        ),
        compiler_params=pltpu.CompilerParams(
            dimension_semantics=("parallel",)),
    )(x,
      kparams["w1"], kparams["b1"],
      kparams["w2"], kparams["b2"],
      kparams["w3"], kparams["b3"],
      kparams["w4"], kparams["b4"])
    return out


def init_params(key):
    """Deterministic f32 init mimicking torch.nn.Linear (U(-1/sqrt(fan_in), +))."""
    dims = [(IN_DIM, L1), (L1, L2), (L2, L3), (L3, OUT_DIM)]
    params = {}
    keys = jax.random.split(key, 2 * len(dims))
    for idx, (fan_in, fan_out) in enumerate(dims):
        bound = 1.0 / jnp.sqrt(float(fan_in))
        params[f"w{idx + 1}"] = jax.random.uniform(
            keys[2 * idx], (fan_in, fan_out), minval=-bound, maxval=bound,
            dtype=jnp.float32)
        params[f"b{idx + 1}"] = jax.random.uniform(
            keys[2 * idx + 1], (1, fan_out), minval=-bound, maxval=bound,
            dtype=jnp.float32)
    return params


def prepare_kernel_params(params):
    """One-time (hoisted out of forward) conversion to the kernel layout:
       * weights cast to bf16 (MXU-native), biases kept f32,
       * layer-3 width zero-padded 64 -> 128 (zero cols in w3/b3, zero rows in
         w4) so h3 is lane-dense; bit-identical since ReLU(0) = 0."""
    w3 = jnp.pad(params["w3"], ((0, 0), (0, L3_PAD - L3)))
    b3 = jnp.pad(params["b3"], ((0, 0), (0, L3_PAD - L3)))
    w4 = jnp.pad(params["w4"], ((0, L3_PAD - L3), (0, 0)))
    return {
        "w1": params["w1"].astype(jnp.bfloat16), "b1": params["b1"],
        "w2": params["w2"].astype(jnp.bfloat16), "b2": params["b2"],
        "w3": w3.astype(jnp.bfloat16),           "b3": b3,
        "w4": w4.astype(jnp.bfloat16),           "b4": params["b4"],
    }


def reference_forward(x, params):
    """Pure-f32 reference matching the PyTorch module."""
    h = jnp.maximum(x @ params["w1"] + params["b1"], 0.0)
    h = jnp.maximum(h @ params["w2"] + params["b2"], 0.0)
    h = jnp.maximum(h @ params["w3"] + params["b3"], 0.0)
    return h @ params["w4"] + params["b4"]


if __name__ == "__main__":
    key = jax.random.PRNGKey(0)
    k_x, k_p, k_big = jax.random.split(key, 3)
    params = init_params(k_p)                    # f32 reference parameters
    kparams = prepare_kernel_params(params)      # bf16 / padded kernel parameters

    # Small-shape check (batch=2, single full-extent block).
    x = jax.random.normal(k_x, (2, IN_DIM), dtype=jnp.float32)
    out = jax.block_until_ready(trainable_mlp_forward(x, kparams))
    ref = reference_forward(x, params)
    assert out.shape == (2, OUT_DIM), out.shape
    assert out.dtype == jnp.float32, out.dtype
    # bf16 matmul operands vs f32 reference -> loosened tolerance (f32 accumulation).
    assert jnp.allclose(out, ref, atol=2e-2, rtol=2e-2), \
        float(jnp.max(jnp.abs(out - ref)))

    # Larger batch: exercises multi-step MXU-aligned tiling + partial last block.
    big_batch = 1040
    x_big = jax.random.normal(k_big, (big_batch, IN_DIM), dtype=jnp.float32)
    out_big = jax.block_until_ready(trainable_mlp_forward(x_big, kparams))
    ref_big = reference_forward(x_big, params)
    assert out_big.shape == (big_batch, OUT_DIM), out_big.shape
    assert jnp.allclose(out_big, ref_big, atol=2e-2, rtol=2e-2), \
        float(jnp.max(jnp.abs(out_big - ref_big)))

    print("KERNEL_OK")
</pallas_src>

<mosaic_0001>
module attributes {stable_mosaic.version = 11 : i64} {
  func.func @_mlp_kernel(%arg0: i32, %arg1: memref<2x32xf32, #tpu.memory_space<vmem>>, %arg2: memref<32x128xbf16, #tpu.memory_space<vmem>>, %arg3: memref<1x128xf32, #tpu.memory_space<vmem>>, %arg4: memref<128x512xbf16, #tpu.memory_space<vmem>>, %arg5: memref<1x512xf32, #tpu.memory_space<vmem>>, %arg6: memref<512x128xbf16, #tpu.memory_space<vmem>>, %arg7: memref<1x128xf32, #tpu.memory_space<vmem>>, %arg8: memref<128x20xbf16, #tpu.memory_space<vmem>>, %arg9: memref<1x20xf32, #tpu.memory_space<vmem>>, %arg10: memref<2x20xf32, #tpu.memory_space<vmem>>) attributes {dimension_semantics = [#tpu.dimension_semantics<parallel>], iteration_bounds = array<i64: 1>, scalar_prefetch = 0 : i64, scratch_operands = 0 : i64, tpu.core_type = #tpu.core_type<tc>, window_params = [{transform_indices = @transform_0, window_bounds = array<i64: 2, 32>}, {pipeline_mode = #tpu.pipeline_mode<synchronous>, transform_indices = @transform_1, window_bounds = array<i64: 32, 128>}, {pipeline_mode = #tpu.pipeline_mode<synchronous>, transform_indices = @transform_2, window_bounds = array<i64: 1, 128>}, {pipeline_mode = #tpu.pipeline_mode<synchronous>, transform_indices = @transform_3, window_bounds = array<i64: 128, 512>}, {pipeline_mode = #tpu.pipeline_mode<synchronous>, transform_indices = @transform_4, window_bounds = array<i64: 1, 512>}, {pipeline_mode = #tpu.pipeline_mode<synchronous>, transform_indices = @transform_5, window_bounds = array<i64: 512, 128>}, {pipeline_mode = #tpu.pipeline_mode<synchronous>, transform_indices = @transform_6, window_bounds = array<i64: 1, 128>}, {pipeline_mode = #tpu.pipeline_mode<synchronous>, transform_indices = @transform_7, window_bounds = array<i64: 128, 20>}, {pipeline_mode = #tpu.pipeline_mode<synchronous>, transform_indices = @transform_8, window_bounds = array<i64: 1, 20>}, {transform_indices = @transform_9, window_bounds = array<i64: 2, 20>}]} {
    %c0 = arith.constant 0 : index
    %c0_0 = arith.constant 0 : index
    %0 = vector.load %arg1[%c0, %c0_0] : memref<2x32xf32, #tpu.memory_space<vmem>>, vector<2x32xf32>
    %1 = arith.truncf %0 : vector<2x32xf32> to vector<2x32xbf16>
    %c0_1 = arith.constant 0 : index
    %c0_2 = arith.constant 0 : index
    %2 = vector.load %arg2[%c0_1, %c0_2] : memref<32x128xbf16, #tpu.memory_space<vmem>>, vector<32x128xbf16>
    %cst = arith.constant dense<0.000000e+00> : vector<2x128xf32>
    %3 = tpu.matmul %1, %2, %cst {dimension_numbers = #tpu.dot_dimension_numbers<[1], [0], [0], [1], [0, 0, 1, 1], [], []>} : vector<2x32xbf16>, vector<32x128xbf16>, vector<2x128xf32> -> vector<2x128xf32>
    %c0_3 = arith.constant 0 : index
    %c0_4 = arith.constant 0 : index
    %4 = vector.load %arg3[%c0_3, %c0_4] : memref<1x128xf32, #tpu.memory_space<vmem>>, vector<1x128xf32>
    %5 = vector.broadcast %4 : vector<1x128xf32> to vector<2x128xf32>
    %6 = arith.addf %3, %5 : vector<2x128xf32>
    %cst_5 = arith.constant 0.000000e+00 : f32
    %7 = vector.broadcast %cst_5 : f32 to vector<2x128xf32>
    %8 = arith.maximumf %6, %7 : vector<2x128xf32>
    %9 = arith.truncf %8 : vector<2x128xf32> to vector<2x128xbf16>
    %c0_6 = arith.constant 0 : index
    %c0_7 = arith.constant 0 : index
    %10 = vector.load %arg4[%c0_6, %c0_7] : memref<128x512xbf16, #tpu.memory_space<vmem>>, vector<128x512xbf16>
    %cst_8 = arith.constant dense<0.000000e+00> : vector<2x512xf32>
    %11 = tpu.matmul %9, %10, %cst_8 {dimension_numbers = #tpu.dot_dimension_numbers<[1], [0], [0], [1], [0, 0, 1, 1], [], []>} : vector<2x128xbf16>, vector<128x512xbf16>, vector<2x512xf32> -> vector<2x512xf32>
    %c0_9 = arith.constant 0 : index
    %c0_10 = arith.constant 0 : index
    %12 = vector.load %arg5[%c0_9, %c0_10] : memref<1x512xf32, #tpu.memory_space<vmem>>, vector<1x512xf32>
    %13 = vector.broadcast %12 : vector<1x512xf32> to vector<2x512xf32>
    %14 = arith.addf %11, %13 : vector<2x512xf32>
    %cst_11 = arith.constant 0.000000e+00 : f32
    %15 = vector.broadcast %cst_11 : f32 to vector<2x512xf32>
    %16 = arith.maximumf %14, %15 : vector<2x512xf32>
    %17 = arith.truncf %16 : vector<2x512xf32> to vector<2x512xbf16>
    %c0_12 = arith.constant 0 : index
    %c0_13 = arith.constant 0 : index
    %18 = vector.load %arg6[%c0_12, %c0_13] : memref<512x128xbf16, #tpu.memory_space<vmem>>, vector<512x128xbf16>
    %cst_14 = arith.constant dense<0.000000e+00> : vector<2x128xf32>
    %19 = tpu.matmul %17, %18, %cst_14 {dimension_numbers = #tpu.dot_dimension_numbers<[1], [0], [0], [1], [0, 0, 1, 1], [], []>} : vector<2x512xbf16>, vector<512x128xbf16>, vector<2x128xf32> -> vector<2x128xf32>
    %c0_15 = arith.constant 0 : index
    %c0_16 = arith.constant 0 : index
    %20 = vector.load %arg7[%c0_15, %c0_16] : memref<1x128xf32, #tpu.memory_space<vmem>>, vector<1x128xf32>
    %21 = vector.broadcast %20 : vector<1x128xf32> to vector<2x128xf32>
    %22 = arith.addf %19, %21 : vector<2x128xf32>
    %cst_17 = arith.constant 0.000000e+00 : f32
    %23 = vector.broadcast %cst_17 : f32 to vector<2x128xf32>
    %24 = arith.maximumf %22, %23 : vector<2x128xf32>
    %25 = arith.truncf %24 : vector<2x128xf32> to vector<2x128xbf16>
    %c0_18 = arith.constant 0 : index
    %c0_19 = arith.constant 0 : index
    %26 = vector.load %arg8[%c0_18, %c0_19] : memref<128x20xbf16, #tpu.memory_space<vmem>>, vector<128x20xbf16>
    %cst_20 = arith.constant dense<0.000000e+00> : vector<2x20xf32>
    %27 = tpu.matmul %25, %26, %cst_20 {dimension_numbers = #tpu.dot_dimension_numbers<[1], [0], [0], [1], [0, 0, 1, 1], [], []>} : vector<2x128xbf16>, vector<128x20xbf16>, vector<2x20xf32> -> vector<2x20xf32>
    %c0_21 = arith.constant 0 : index
    %c0_22 = arith.constant 0 : index
    %28 = vector.load %arg9[%c0_21, %c0_22] : memref<1x20xf32, #tpu.memory_space<vmem>>, vector<1x20xf32>
    %29 = vector.broadcast %28 : vector<1x20xf32> to vector<2x20xf32>
    %30 = arith.addf %27, %29 : vector<2x20xf32>
    %c0_23 = arith.constant 0 : index
    %c0_24 = arith.constant 0 : index
    %31 = vector.load %arg10[%c0_23, %c0_24] : memref<2x20xf32, #tpu.memory_space<vmem>>, vector<2x20xf32>
    tpu.vector_store %arg10[%c0_23, %c0_24], %30 {strides = array<i32>} : memref<2x20xf32, #tpu.memory_space<vmem>>, vector<2x20xf32>,
    return
  }
  func.func @transform_0(%arg0: i32) -> (i32, i32) {
    %c0_i32 = arith.constant 0 : i32
    %c0_i32_0 = arith.constant 0 : i32
    return %arg0, %c0_i32 : i32, i32
  }
  func.func @transform_1(%arg0: i32) -> (i32, i32) {
    %c0_i32 = arith.constant 0 : i32
    %c0_i32_0 = arith.constant 0 : i32
    %c0_i32_1 = arith.constant 0 : i32
    return %c0_i32, %c0_i32_0 : i32, i32
  }
  func.func @transform_2(%arg0: i32) -> (i32, i32) {
    %c0_i32 = arith.constant 0 : i32
    %c0_i32_0 = arith.constant 0 : i32
    %c0_i32_1 = arith.constant 0 : i32
    return %c0_i32, %c0_i32_0 : i32, i32
  }
  func.func @transform_3(%arg0: i32) -> (i32, i32) {
    %c0_i32 = arith.constant 0 : i32
    %c0_i32_0 = arith.constant 0 : i32
    %c0_i32_1 = arith.constant 0 : i32
    return %c0_i32, %c0_i32_0 : i32, i32
  }
  func.func @transform_4(%arg0: i32) -> (i32, i32) {
    %c0_i32 = arith.constant 0 : i32
    %c0_i32_0 = arith.constant 0 : i32
    %c0_i32_1 = arith.constant 0 : i32
    return %c0_i32, %c0_i32_0 : i32, i32
  }
  func.func @transform_5(%arg0: i32) -> (i32, i32) {
    %c0_i32 = arith.constant 0 : i32
    %c0_i32_0 = arith.constant 0 : i32
    %c0_i32_1 = arith.constant 0 : i32
    return %c0_i32, %c0_i32_0 : i32, i32
  }
  func.func @transform_6(%arg0: i32) -> (i32, i32) {
    %c0_i32 = arith.constant 0 : i32
    %c0_i32_0 = arith.constant 0 : i32
    %c0_i32_1 = arith.constant 0 : i32
    return %c0_i32, %c0_i32_0 : i32, i32
  }
  func.func @transform_7(%arg0: i32) -> (i32, i32) {
    %c0_i32 = arith.constant 0 : i32
    %c0_i32_0 = arith.constant 0 : i32
    %c0_i32_1 = arith.constant 0 : i32
    return %c0_i32, %c0_i32_0 : i32, i32
  }
  func.func @transform_8(%arg0: i32) -> (i32, i32) {
    %c0_i32 = arith.constant 0 : i32
    %c0_i32_0 = arith.constant 0 : i32
    %c0_i32_1 = arith.constant 0 : i32
    return %c0_i32, %c0_i32_0 : i32, i32
  }
  func.func @transform_9(%arg0: i32) -> (i32, i32) {
    %c0_i32 = arith.constant 0 : i32
    %c0_i32_0 = arith.constant 0 : i32
    return %arg0, %c0_i32 : i32, i32
  }
}

</mosaic_0001>

<llo_original>
// kernel: trainable_mlp_forward.1
$region0: #{trainable_mlp_forward.1}
  #allocation0 [shape = 'u32[]', space=smem, size = 0x4, offset = 0x4, fixed_abs, tag = 'smem constant byte address 0x4 - core index']
  #allocation1 [shape = 'u32[144,128]{1,0:T(1,128)}', space=vmem, size = 0x12000, scoped, tag = 'internal scratch']
  %s0 = inlined_call_operand.vmem [shape: f32[2,32], index: 0, kind: input, shape index: {}]
  %s1 = inlined_call_operand.vmem [shape: bf16[32,128], index: 1, kind: input, shape index: {}]
  %s2 = inlined_call_operand.vmem [shape: f32[1,128], index: 2, kind: input, shape index: {}]
  %s3 = inlined_call_operand.hbm [shape: bf16[128,512], index: 3, kind: input, shape index: {}]
  %s4 = inlined_call_operand.vmem [shape: f32[1,512], index: 4, kind: input, shape index: {}]
  %s5 = inlined_call_operand.hbm [shape: bf16[512,128], index: 5, kind: input, shape index: {}]
  %s6 = inlined_call_operand.vmem [shape: f32[1,128], index: 6, kind: input, shape index: {}]
  %s7 = inlined_call_operand.vmem [shape: bf16[128,20], index: 7, kind: input, shape index: {}]
  %s8 = inlined_call_operand.vmem [shape: f32[1,20], index: 8, kind: input, shape index: {}]
  %s9 = inlined_call_operand.hbm [shape: f32[2,20], index: 9, kind: output, shape index: {}]
  %s10 = sld [smem:[#allocation0]]
  $region54: #{trainable_mlp_forward.1} parent=0
    _
  %s12 = ssub.s32 1, %s10
  %s13 = scalar_select 0, %s12, %s10
  $region1: #{trainable_mlp_forward.1} parent=0
    #allocation2 [shape = 'u8[131072]{0}', space=vmem, size = 0x20000, scoped, tag = 'input window, operand 3, single buffered']
    #allocation3 [shape = 's32[1]{0}', space=sflag, size = 0x4, scoped, tag = 'scoped memory for trainable_mlp_forward.1']
    #allocation4 [shape = 's32[1]{0}', space=sflag, size = 0x4, scoped, tag = 'scoped memory for trainable_mlp_forward.1']
    #allocation5 [shape = 'u8[131072]{0}', space=vmem, size = 0x20000, scoped, tag = 'input window, operand 5, single buffered']
    #allocation6 [shape = 's32[1]{0}', space=sflag, size = 0x4, scoped, tag = 'scoped memory for trainable_mlp_forward.1']
    #allocation7 [shape = 'u8[1024]{0}', space=vmem, size = 0x400, scoped, tag = 'output window, operand 0, single buffered']
    %14 = vsyncpa [#allocation3], 0
    %15 = vsyncpa [#allocation6], 0
    %16 = vsyncpa [#allocation4], 0
    // Predicated region
    $region2: #{trainable_mlp_forward.1} parent=1 // pred_check
      _
    $region3: #{trainable_mlp_forward.1} parent=1 // pred_check_branch
      %18 = sbr.rel (0) target = $region5
    $region4: #{trainable_mlp_forward.1} parent=1 // pred_region
      _
    $region5: #{trainable_mlp_forward.1} parent=1 // pred_fallthru
      _
    // Predicated region
    $region6: #{trainable_mlp_forward.1} parent=1 // pred_check
      _
    $region7: #{trainable_mlp_forward.1} parent=1 // pred_check_branch
      %20 = sbr.rel (0) target = $region9
    $region8: #{trainable_mlp_forward.1} parent=1 // pred_region
      _
    $region9: #{trainable_mlp_forward.1} parent=1 // pred_fallthru
      _
    // Predicated region
    $region10: #{trainable_mlp_forward.1} parent=1 // pred_check
      _
    $region11: #{trainable_mlp_forward.1} parent=1 // pred_check_branch
      %22 = sbr.rel (0) target = $region13
    $region12: #{trainable_mlp_forward.1} parent=1 // pred_region
      _
    $region13: #{trainable_mlp_forward.1} parent=1 // pred_fallthru
      _
    // Predicated region
    $region14: #{trainable_mlp_forward.1} parent=1 // pred_check
      _
    $region15: #{trainable_mlp_forward.1} parent=1 // pred_check_branch
      %24 = sbr.rel (0) target = $region17
    $region16: #{trainable_mlp_forward.1} parent=1 // pred_region
      %s26 = ssub.s32 4096, 4096
      %27 = vsyncadd [#allocation3], %s26
      %s28 = sshll.u32 [#allocation2], 4
      %s29 = int_to_ptr.vmem [resolvable:$true] %s28
      %34 = dma.hbm_to_vmem [thread:$0]  %s3, 4096, %s29, [#allocation3], 256, 256, 16
    $region17: #{trainable_mlp_forward.1} parent=1 // pred_fallthru
      _
    // Predicated region
    $region18: #{trainable_mlp_forward.1} parent=1 // pred_check
      _
    $region19: #{trainable_mlp_forward.1} parent=1 // pred_check_branch
      %36 = sbr.rel (0) target = $region21
    $region20: #{trainable_mlp_forward.1} parent=1 // pred_region
      _
    $region21: #{trainable_mlp_forward.1} parent=1 // pred_fallthru
      _
    // Predicated region
    $region22: #{trainable_mlp_forward.1} parent=1 // pred_check
      _
    $region23: #{trainable_mlp_forward.1} parent=1 // pred_check_branch
      %38 = sbr.rel (0) target = $region25
    $region24: #{trainable_mlp_forward.1} parent=1 // pred_region
      %s40 = ssub.s32 4096, 4096
      %41 = vsyncadd [#allocation6], %s40
      %s42 = sshll.u32 [#allocation5], 4
      %s43 = int_to_ptr.vmem [resolvable:$true] %s42
      %48 = dma.hbm_to_vmem [thread:$0]  %s5, 4096, %s43, [#allocation6], 64, 64, 4
    $region25: #{trainable_mlp_forward.1} parent=1 // pred_fallthru
      _
    // Predicated region
    $region26: #{trainable_mlp_forward.1} parent=1 // pred_check
      _
    $region27: #{trainable_mlp_forward.1} parent=1 // pred_check_branch
      %50 = sbr.rel (0) target = $region29
    $region28: #{trainable_mlp_forward.1} parent=1 // pred_region
      _
    $region29: #{trainable_mlp_forward.1} parent=1 // pred_fallthru
      _
    // Predicated region
    $region30: #{trainable_mlp_forward.1} parent=1 // pred_check
      _
    $region31: #{trainable_mlp_forward.1} parent=1 // pred_check_branch
      %52 = sbr.rel (0) target = $region33
    $region32: #{trainable_mlp_forward.1} parent=1 // pred_region
      _
    $region33: #{trainable_mlp_forward.1} parent=1 // pred_fallthru
      _
    // Predicated region
    $region34: #{trainable_mlp_forward.1} parent=1 // pred_check
      _
    $region35: #{trainable_mlp_forward.1} parent=1 // pred_check_branch
      %54 = sbr.rel (0) target = $region37
    $region36: #{trainable_mlp_forward.1} parent=1 // pred_region
      _
    $region37: #{trainable_mlp_forward.1} parent=1 // pred_fallthru
      _
    // Predicated region
    $region38: #{trainable_mlp_forward.1} parent=1 // pred_check
      _
    $region39: #{trainable_mlp_forward.1} parent=1 // pred_check_branch
      %56 = sbr.rel (0) target = $region41
    $region40: #{trainable_mlp_forward.1} parent=1 // pred_region
      %57 = dma.done [#allocation3], 4096
    $region41: #{trainable_mlp_forward.1} parent=1 // pred_fallthru
      _
    // Predicated region
    $region42: #{trainable_mlp_forward.1} parent=1 // pred_check
      _
    $region43: #{trainable_mlp_forward.1} parent=1 // pred_check_branch
      %59 = sbr.rel (0) target = $region45
    $region44: #{trainable_mlp_forward.1} parent=1 // pred_region
      %60 = dma.done [#allocation6], 4096
    $region45: #{trainable_mlp_forward.1} parent=1 // pred_fallthru
      _
    %v62 = vld [vmem:[%s0] sm:$0x3]
    %v63 = vpack.c.bf16 %v62, %v62
    %v64 = vld [vmem:[%s1] sm:$0xf]
    %v65 = vld [vmem:[%s1 + $0x4] sm:$0xf]
    %v66 = vld [vmem:[%s1 + $0x8] sm:$0xf]
    %v67 = vld [vmem:[%s1 + $0xc] sm:$0xf]
    %v68 = vld [vmem:[%s2] sm:$0x1]
    %v70 = vlaneseq
    %v71 = vshrl.u32 %v70, 7
    %v72 = vsub.s32 0, %v71
    %v73 = vrot.slane %v68, %v72
    %v79 = vunpack.c.l.b16 %v64
    %v80 = vunpack.c.l.b16 %v65
    %v81 = vunpack.c.l.b16 %v66
    %v82 = vunpack.c.l.b16 %v67
    %v83 = vpack.c.b16 %v80, %v79
    %v84 = vpack.c.b16 %v82, %v81
    %vm87 = vcmask 261120
    %v89 = vsel %vm87, %v63, 0
    %91 = vmatprep.subr.bf16.mxu0 0
    %92 = vmatpush1.bf16.msra.mxu0 %v83
    %93 = vmatprep.subr.bf16.mxu0 0
    %94 = vmatpush1.bf16.msra.mxu0 %v84
    %95 = vmatprep.subr.bf16.mxu0 0
    %96 = vmatpush1.bf16.msra.mxu0 0
    %97 = vmatprep.subr.bf16.mxu0 0
    %98 = vmatpush1.bf16.msra.mxu0 0
    %99 = vmatprep.subr.bf16.mxu0 0
    %100 = vmatpush1.bf16.msra.mxu0 0
    %101 = vmatprep.subr.bf16.mxu0 0
    %102 = vmatpush1.bf16.msra.mxu0 0
    %103 = vmatprep.subr.bf16.mxu0 0
    %104 = vmatpush1.bf16.msra.mxu0 0
    %105 = vmatprep.subr.bf16.mxu0 0
    %106 = vmatpush1.bf16.msra.mxu0 0
    %107 = vmatprep.subr.bf16.mxu0 0
    %108 = vmatpush1.bf16.msra.mxu0 0
    %109 = vmatprep.subr.bf16.mxu0 0
    %110 = vmatpush1.bf16.msra.mxu0 0
    %111 = vmatprep.subr.bf16.mxu0 0
    %112 = vmatpush1.bf16.msra.mxu0 0
    %113 = vmatprep.subr.bf16.mxu0 0
    %114 = vmatpush1.bf16.msra.mxu0 0
    %115 = vmatprep.subr.bf16.mxu0 0
    %116 = vmatpush1.bf16.msra.mxu0 0
    %117 = vmatprep.subr.bf16.mxu0 0
    %118 = vmatpush1.bf16.msra.mxu0 0
    %119 = vmatprep.subr.bf16.mxu0 0
    %120 = vmatpush1.bf16.msra.mxu0 0
    %121 = vmatprep.subr.bf16.mxu0 0
    %122 = vmatpush1.bf16.msra.mxu0 0
    %123 = vmatprep.mubr.bf16.mxu0 0
    %124 = vmatmul.mubr.bf16.gmra.mrb[0].mxu0 %v89
    %v125 = vpop.f32.mrb[0].mxu0
    %v126 = vadd.f32 %v73, %v125
    %v127 = vpop.f32.mrb[0].mxu0
    %v128 = vpop.f32.mrb[0].mxu0
    %v129 = vpop.f32.mrb[0].mxu0
    %130 = vdwg.mxu0
    %v131 = vmax.f32 %v126, 0.0
    %v132 = vpack.c.bf16 %v131, %v131
    %v133 = vld [vmem:[#allocation2] sm:$0xff]
    %v134 = vld [vmem:[#allocation2 + $0x8] sm:$0xff]
    %v135 = vld [vmem:[#allocation2 + $0x10] sm:$0xff]
    %v136 = vld [vmem:[#allocation2 + $0x18] sm:$0xff]
    %v137 = vld [vmem:[#allocation2 + $0x20] sm:$0xff]
    %v138 = vld [vmem:[#allocation2 + $0x28] sm:$0xff]
    %v139 = vld [vmem:[#allocation2 + $0x30] sm:$0xff]
    %v140 = vld [vmem:[#allocation2 + $0x38] sm:$0xff]
    %v141 = vld [vmem:[#allocation2 + $0x40] sm:$0xff]
    %v142 = vld [vmem:[#allocation2 + $0x48] sm:$0xff]
    %v143 = vld [vmem:[#allocation2 + $0x50] sm:$0xff]
    %v144 = vld [vmem:[#allocation2 + $0x58] sm:$0xff]
    %v145 = vld [vmem:[#allocation2 + $0x60] sm:$0xff]
    %v146 = vld [vmem:[#allocation2 + $0x68] sm:$0xff]
    %v147 = vld [vmem:[#allocation2 + $0x70] sm:$0xff]
    %v148 = vld [vmem:[#allocation2 + $0x78] sm:$0xff]
    %v149 = vld [vmem:[#allocation2 + $0x80] sm:$0xff]
    %v150 = vld [vmem:[#allocation2 + $0x88] sm:$0xff]
    %v151 = vld [vmem:[#allocation2 + $0x90] sm:$0xff]
    %v152 = vld [vmem:[#allocation2 + $0x98] sm:$0xff]
    %v153 = vld [vmem:[#allocation2 + $0xa0] sm:$0xff]
    %v154 = vld [vmem:[#allocation2 + $0xa8] sm:$0xff]
    %v155 = vld [vmem:[#allocation2 + $0xb0] sm:$0xff]
    %v156 = vld [vmem:[#allocation2 + $0xb8] sm:$0xff]
    %v157 = vld [vmem:[#allocation2 + $0xc0] sm:$0xff]
    %v158 = vld [vmem:[#allocation2 + $0xc8] sm:$0xff]
    %v159 = vld [vmem:[#allocation2 + $0xd0] sm:$0xff]
    %v160 = vld [vmem:[#allocation2 + $0xd8] sm:$0xff]
    %v161 = vld [vmem:[#allocation2 + $0xe0] sm:$0xff]
    %v162 = vld [vmem:[#allocation2 + $0xe8] sm:$0xff]
    %v163 = vld [vmem:[#allocation2 + $0xf0] sm:$0xff]
    %v164 = vld [vmem:[#allocation2 + $0xf8] sm:$0xff]
    %v165 = vld [vmem:[%s4] sm:$0xf]
    %v167 = vlaneseq
    %v168 = vshrl.u32 %v167, 7
    %v169 = vsub.s32 0, %v168
    %v170 = vrot.slane %v165, %v169
    %v171 = vlaneseq
    %v172 = vshrl.u32 %v171, 7
    %v173 = vsub.s32 1, %v172
    %v174 = vrot.slane %v165, %v173
    %v175 = vlaneseq
    %v176 = vshrl.u32 %v175, 7
    %v177 = vsub.s32 2, %v176
    %v178 = vrot.slane %v165, %v177
    %v179 = vlaneseq
    %v180 = vshrl.u32 %v179, 7
    %v181 = vsub.s32 3, %v180
    %v182 = vrot.slane %v165, %v181
    %v219 = vunpack.c.l.b16 %v133
    %v220 = vunpack.c.h.b16 %v133
    %v221 = vunpack.c.l.b16 %v134
    %v222 = vunpack.c.h.b16 %v134
    %v223 = vunpack.c.l.b16 %v135
    %v224 = vunpack.c.h.b16 %v135
    %v225 = vunpack.c.l.b16 %v136
    %v226 = vunpack.c.h.b16 %v136
    %v227 = vunpack.c.l.b16 %v137
    %v228 = vunpack.c.h.b16 %v137
    %v229 = vunpack.c.l.b16 %v138
    %v230 = vunpack.c.h.b16 %v138
    %v231 = vunpack.c.l.b16 %v139
    %v232 = vunpack.c.h.b16 %v139
    %v233 = vunpack.c.l.b16 %v140
    %v234 = vunpack.c.h.b16 %v140
    %v235 = vunpack.c.l.b16 %v141
    %v236 = vunpack.c.h.b16 %v141
    %v237 = vunpack.c.l.b16 %v142
    %v238 = vunpack.c.h.b16 %v142
    %v239 = vunpack.c.l.b16 %v143
    %v240 = vunpack.c.h.b16 %v143
    %v241 = vunpack.c.l.b16 %v144
    %v242 = vunpack.c.h.b16 %v144
    %v243 = vunpack.c.l.b16 %v145
    %v244 = vunpack.c.h.b16 %v145
    %v245 = vunpack.c.l.b16 %v146
    %v246 = vunpack.c.h.b16 %v146
    %v247 = vunpack.c.l.b16 %v147
    %v248 = vunpack.c.h.b16 %v147
    %v249 = vunpack.c.l.b16 %v148
    %v250 = vunpack.c.h.b16 %v148
    %v251 = vunpack.c.l.b16 %v149
    %v252 = vunpack.c.h.b16 %v149
    %v253 = vunpack.c.l.b16 %v150
    %v254 = vunpack.c.h.b16 %v150
    %v255 = vunpack.c.l.b16 %v151
    %v256 = vunpack.c.h.b16 %v151
    %v257 = vunpack.c.l.b16 %v152
    %v258 = vunpack.c.h.b16 %v152
    %v259 = vunpack.c.l.b16 %v153
    %v260 = vunpack.c.h.b16 %v153
    %v261 = vunpack.c.l.b16 %v154
    %v262 = vunpack.c.h.b16 %v154
    %v263 = vunpack.c.l.b16 %v155
    %v264 = vunpack.c.h.b16 %v155
    %v265 = vunpack.c.l.b16 %v156
    %v266 = vunpack.c.h.b16 %v156
    %v267 = vunpack.c.l.b16 %v157
    %v268 = vunpack.c.h.b16 %v157
    %v269 = vunpack.c.l.b16 %v158
    %v270 = vunpack.c.h.b16 %v158
    %v271 = vunpack.c.l.b16 %v159
    %v272 = vunpack.c.h.b16 %v159
    %v273 = vunpack.c.l.b16 %v160
    %v274 = vunpack.c.h.b16 %v160
    %v275 = vunpack.c.l.b16 %v161
    %v276 = vunpack.c.h.b16 %v161
    %v277 = vunpack.c.l.b16 %v162
    %v278 = vunpack.c.h.b16 %v162
    %v279 = vunpack.c.l.b16 %v163
    %v280 = vunpack.c.h.b16 %v163
    %v281 = vunpack.c.l.b16 %v164
    %v282 = vunpack.c.h.b16 %v164
    %v283 = vpack.c.b16 %v223, %v219
    %v284 = vpack.c.b16 %v224, %v220
    %v285 = vpack.c.b16 %v225, %v221
    %v286 = vpack.c.b16 %v226, %v222
    %v287 = vpack.c.b16 %v231, %v227
    %v288 = vpack.c.b16 %v232, %v228
    %v289 = vpack.c.b16 %v233, %v229
    %v290 = vpack.c.b16 %v234, %v230
    %v291 = vpack.c.b16 %v239, %v235
    %v292 = vpack.c.b16 %v240, %v236
    %v293 = vpack.c.b16 %v241, %v237
    %v294 = vpack.c.b16 %v242, %v238
    %v295 = vpack.c.b16 %v247, %v243
    %v296 = vpack.c.b16 %v248, %v244
    %v297 = vpack.c.b16 %v249, %v245
    %v298 = vpack.c.b16 %v250, %v246
    %v299 = vpack.c.b16 %v255, %v251
    %v300 = vpack.c.b16 %v256, %v252
    %v301 = vpack.c.b16 %v257, %v253
    %v302 = vpack.c.b16 %v258, %v254
    %v303 = vpack.c.b16 %v263, %v259
    %v304 = vpack.c.b16 %v264, %v260
    %v305 = vpack.c.b16 %v265, %v261
    %v306 = vpack.c.b16 %v266, %v262
    %v307 = vpack.c.b16 %v271, %v267
    %v308 = vpack.c.b16 %v272, %v268
    %v309 = vpack.c.b16 %v273, %v269
    %v310 = vpack.c.b16 %v274, %v270
    %v311 = vpack.c.b16 %v279, %v275
    %v312 = vpack.c.b16 %v280, %v276
    %v313 = vpack.c.b16 %v281, %v277
    %v314 = vpack.c.b16 %v282, %v278
    %347 = vmatprep.subr.bf16.mxu0 %v284
    %348 = vmatpush1.bf16.msra.mxu0 %v283
    %349 = vmatprep.subr.bf16.mxu0 %v288
    %350 = vmatpush1.bf16.msra.mxu0 %v287
    %351 = vmatprep.subr.bf16.mxu0 %v292
    %352 = vmatpush1.bf16.msra.mxu0 %v291
    %353 = vmatprep.subr.bf16.mxu0 %v296
    %354 = vmatpush1.bf16.msra.mxu0 %v295
    %355 = vmatprep.subr.bf16.mxu0 %v300
    %356 = vmatpush1.bf16.msra.mxu0 %v299
    %357 = vmatprep.subr.bf16.mxu0 %v304
    %358 = vmatpush1.bf16.msra.mxu0 %v303
    %359 = vmatprep.subr.bf16.mxu0 %v308
    %360 = vmatpush1.bf16.msra.mxu0 %v307
    %361 = vmatprep.subr.bf16.mxu0 %v312
    %362 = vmatpush1.bf16.msra.mxu0 %v311
    %363 = vmatprep.subr.bf16.mxu0 0
    %364 = vmatpush1.bf16.msra.mxu0 0
    %365 = vmatprep.subr.bf16.mxu0 0
    %366 = vmatpush1.bf16.msra.mxu0 0
    %367 = vmatprep.subr.bf16.mxu0 0
    %368 = vmatpush1.bf16.msra.mxu0 0
    %369 = vmatprep.subr.bf16.mxu0 0
    %370 = vmatpush1.bf16.msra.mxu0 0
    %371 = vmatprep.subr.bf16.mxu0 0
    %372 = vmatpush1.bf16.msra.mxu0 0
    %373 = vmatprep.subr.bf16.mxu0 0
    %374 = vmatpush1.bf16.msra.mxu0 0
    %375 = vmatprep.subr.bf16.mxu0 0
    %376 = vmatpush1.bf16.msra.mxu0 0
    %377 = vmatprep.subr.bf16.mxu0 0
    %378 = vmatpush1.bf16.msra.mxu0 0
    %379 = vmatprep.mubr.bf16.mxu0 0
    %380 = vmatmul.mubr.bf16.gmra.mrb[0].mxu0 %v132
    %v381 = vpop.f32.mrb[0].mxu0
    %v382 = vadd.f32 %v170, %v381
    %v383 = vpop.f32.mrb[0].mxu0
    %v384 = vadd.f32 %v174, %v383
    %v385 = vpop.f32.mrb[0].mxu0
    %v386 = vpop.f32.mrb[0].mxu0
    %387 = vdwg.mxu0
    %388 = vmatprep.subr.bf16.mxu0 %v286
    %389 = vmatpush1.bf16.msra.mxu0 %v285
    %390 = vmatprep.subr.bf16.mxu0 %v290
    %391 = vmatpush1.bf16.msra.mxu0 %v289
    %392 = vmatprep.subr.bf16.mxu0 %v294
    %393 = vmatpush1.bf16.msra.mxu0 %v293
    %394 = vmatprep.subr.bf16.mxu0 %v298
    %395 = vmatpush1.bf16.msra.mxu0 %v297
    %396 = vmatprep.subr.bf16.mxu0 %v302
    %397 = vmatpush1.bf16.msra.mxu0 %v301
    %398 = vmatprep.subr.bf16.mxu0 %v306
    %399 = vmatpush1.bf16.msra.mxu0 %v305
    %400 = vmatprep.subr.bf16.mxu0 %v310
    %401 = vmatpush1.bf16.msra.mxu0 %v309
    %402 = vmatprep.subr.bf16.mxu0 %v314
    %403 = vmatpush1.bf16.msra.mxu0 %v313
    %404 = vmatprep.subr.bf16.mxu0 0
    %405 = vmatpush1.bf16.msra.mxu0 0
    %406 = vmatprep.subr.bf16.mxu0 0
    %407 = vmatpush1.bf16.msra.mxu0 0
    %408 = vmatprep.subr.bf16.mxu0 0
    %409 = vmatpush1.bf16.msra.mxu0 0
    %410 = vmatprep.subr.bf16.mxu0 0
    %411 = vmatpush1.bf16.msra.mxu0 0
    %412 = vmatprep.subr.bf16.mxu0 0
    %413 = vmatpush1.bf16.msra.mxu0 0
    %414 = vmatprep.subr.bf16.mxu0 0
    %415 = vmatpush1.bf16.msra.mxu0 0
    %416 = vmatprep.subr.bf16.mxu0 0
    %417 = vmatpush1.bf16.msra.mxu0 0
    %418 = vmatprep.subr.bf16.mxu0 0
    %419 = vmatpush1.bf16.msra.mxu0 0
    %420 = vmatprep.mubr.bf16.mxu0 0
    %421 = vmatmul.mubr.bf16.gmra.mrb[0].mxu0 %v132
    %v422 = vpop.f32.mrb[0].mxu0
    %v423 = vadd.f32 %v178, %v422
    %v424 = vpop.f32.mrb[0].mxu0
    %v425 = vadd.f32 %v182, %v424
    %v426 = vpop.f32.mrb[0].mxu0
    %v427 = vpop.f32.mrb[0].mxu0
    %428 = vdwg.mxu0
    %v429 = vmax.f32 %v382, 0.0
    %v430 = vmax.f32 %v384, 0.0
    %v431 = vmax.f32 %v423, 0.0
    %v432 = vmax.f32 %v425, 0.0
    %v433 = vpack.c.bf16 %v429, %v429
    %v434 = vpack.c.bf16 %v430, %v430
    %v435 = vpack.c.bf16 %v431, %v431
    %v436 = vpack.c.bf16 %v432, %v432
    %v437 = vld [vmem:[#allocation5] sm:$0xf]
    %v438 = vld [vmem:[#allocation5 + $0x4] sm:$0xf]
    %v439 = vld [vmem:[#allocation5 + $0x8] sm:$0xf]
    %v440 = vld [vmem:[#allocation5 + $0xc] sm:$0xf]
    %v441 = vld [vmem:[#allocation5 + $0x10] sm:$0xf]
    %v442 = vld [vmem:[#allocation5 + $0x14] sm:$0xf]
    %v443 = vld [vmem:[#allocation5 + $0x18] sm:$0xf]
    %v444 = vld [vmem:[#allocation5 + $0x1c] sm:$0xf]
    %v445 = vld [vmem:[#allocation5 + $0x20] sm:$0xf]
    %v446 = vld [vmem:[#allocation5 + $0x24] sm:$0xf]
    %v447 = vld [vmem:[#allocation5 + $0x28] sm:$0xf]
    %v448 = vld [vmem:[#allocation5 + $0x2c] sm:$0xf]
    %v449 = vld [vmem:[#allocation5 + $0x30] sm:$0xf]
    %v450 = vld [vmem:[#allocation5 + $0x34] sm:$0xf]
    %v451 = vld [vmem:[#allocation5 + $0x38] sm:$0xf]
    %v452 = vld [vmem:[#allocation5 + $0x3c] sm:$0xf]
    %v453 = vld [vmem:[#allocation5 + $0x40] sm:$0xf]
    %v454 = vld [vmem:[#allocation5 + $0x44] sm:$0xf]
    %v455 = vld [vmem:[#allocation5 + $0x48] sm:$0xf]
    %v456 = vld [vmem:[#allocation5 + $0x4c] sm:$0xf]
    %v457 = vld [vmem:[#allocation5 + $0x50] sm:$0xf]
    %v458 = vld [vmem:[#allocation5 + $0x54] sm:$0xf]
    %v459 = vld [vmem:[#allocation5 + $0x58] sm:$0xf]
    %v460 = vld [vmem:[#allocation5 + $0x5c] sm:$0xf]
    %v461 = vld [vmem:[#allocation5 + $0x60] sm:$0xf]
    %v462 = vld [vmem:[#allocation5 + $0x64] sm:$0xf]
    %v463 = vld [vmem:[#allocation5 + $0x68] sm:$0xf]
    %v464 = vld [vmem:[#allocation5 + $0x6c] sm:$0xf]
    %v465 = vld [vmem:[#allocation5 + $0x70] sm:$0xf]
    %v466 = vld [vmem:[#allocation5 + $0x74] sm:$0xf]
    %v467 = vld [vmem:[#allocation5 + $0x78] sm:$0xf]
    %v468 = vld [vmem:[#allocation5 + $0x7c] sm:$0xf]
    %v469 = vld [vmem:[#allocation5 + $0x80] sm:$0xf]
    %v470 = vld [vmem:[#allocation5 + $0x84] sm:$0xf]
    %v471 = vld [vmem:[#allocation5 + $0x88] sm:$0xf]
    %v472 = vld [vmem:[#allocation5 + $0x8c] sm:$0xf]
    %v473 = vld [vmem:[#allocation5 + $0x90] sm:$0xf]
    %v474 = vld [vmem:[#allocation5 + $0x94] sm:$0xf]
    %v475 = vld [vmem:[#allocation5 + $0x98] sm:$0xf]
    %v476 = vld [vmem:[#allocation5 + $0x9c] sm:$0xf]
    %v477 = vld [vmem:[#allocation5 + $0xa0] sm:$0xf]
    %v478 = vld [vmem:[#allocation5 + $0xa4] sm:$0xf]
    %v479 = vld [vmem:[#allocation5 + $0xa8] sm:$0xf]
    %v480 = vld [vmem:[#allocation5 + $0xac] sm:$0xf]
    %v481 = vld [vmem:[#allocation5 + $0xb0] sm:$0xf]
    %v482 = vld [vmem:[#allocation5 + $0xb4] sm:$0xf]
    %v483 = vld [vmem:[#allocation5 + $0xb8] sm:$0xf]
    %v484 = vld [vmem:[#allocation5 + $0xbc] sm:$0xf]
    %v485 = vld [vmem:[#allocation5 + $0xc0] sm:$0xf]
    %v486 = vld [vmem:[#allocation5 + $0xc4] sm:$0xf]
    %v487 = vld [vmem:[#allocation5 + $0xc8] sm:$0xf]
    %v488 = vld [vmem:[#allocation5 + $0xcc] sm:$0xf]
    %v489 = vld [vmem:[#allocation5 + $0xd0] sm:$0xf]
    %v490 = vld [vmem:[#allocation5 + $0xd4] sm:$0xf]
    %v491 = vld [vmem:[#allocation5 + $0xd8] sm:$0xf]
    %v492 = vld [vmem:[#allocation5 + $0xdc] sm:$0xf]
    %v493 = vld [vmem:[#allocation5 + $0xe0] sm:$0xf]
    %v494 = vld [vmem:[#allocation5 + $0xe4] sm:$0xf]
    %v495 = vld [vmem:[#allocation5 + $0xe8] sm:$0xf]
    %v496 = vld [vmem:[#allocation5 + $0xec] sm:$0xf]
    %v497 = vld [vmem:[#allocation5 + $0xf0] sm:$0xf]
    %v498 = vld [vmem:[#allocation5 + $0xf4] sm:$0xf]
    %v499 = vld [vmem:[#allocation5 + $0xf8] sm:$0xf]
    %v500 = vld [vmem:[#allocation5 + $0xfc] sm:$0xf]
    %v501 = vld [vmem:[%s6] sm:$0x1]
    %v503 = vlaneseq
    %v504 = vshrl.u32 %v503, 7
    %v505 = vsub.s32 0, %v504
    %v506 = vrot.slane %v501, %v505
    %v572 = vunpack.c.l.b16 %v437
    %v573 = vunpack.c.l.b16 %v438
    %v574 = vunpack.c.l.b16 %v439
    %v575 = vunpack.c.l.b16 %v440
    %v576 = vunpack.c.l.b16 %v441
    %v577 = vunpack.c.l.b16 %v442
    %v578 = vunpack.c.l.b16 %v443
    %v579 = vunpack.c.l.b16 %v444
    %v580 = vunpack.c.l.b16 %v445
    %v581 = vunpack.c.l.b16 %v446
    %v582 = vunpack.c.l.b16 %v447
    %v583 = vunpack.c.l.b16 %v448
    %v584 = vunpack.c.l.b16 %v449
    %v585 = vunpack.c.l.b16 %v450
    %v586 = vunpack.c.l.b16 %v451
    %v587 = vunpack.c.l.b16 %v452
    %v588 = vunpack.c.l.b16 %v453
    %v589 = vunpack.c.l.b16 %v454
    %v590 = vunpack.c.l.b16 %v455
    %v591 = vunpack.c.l.b16 %v456
    %v592 = vunpack.c.l.b16 %v457
    %v593 = vunpack.c.l.b16 %v458
    %v594 = vunpack.c.l.b16 %v459
    %v595 = vunpack.c.l.b16 %v460
    %v596 = vunpack.c.l.b16 %v461
    %v597 = vunpack.c.l.b16 %v462
    %v598 = vunpack.c.l.b16 %v463
    %v599 = vunpack.c.l.b16 %v464
    %v600 = vunpack.c.l.b16 %v465
    %v601 = vunpack.c.l.b16 %v466
    %v602 = vunpack.c.l.b16 %v467
    %v603 = vunpack.c.l.b16 %v468
    %v604 = vunpack.c.l.b16 %v469
    %v605 = vunpack.c.l.b16 %v470
    %v606 = vunpack.c.l.b16 %v471
    %v607 = vunpack.c.l.b16 %v472
    %v608 = vunpack.c.l.b16 %v473
    %v609 = vunpack.c.l.b16 %v474
    %v610 = vunpack.c.l.b16 %v475
    %v611 = vunpack.c.l.b16 %v476
    %v612 = vunpack.c.l.b16 %v477
    %v613 = vunpack.c.l.b16 %v478
    %v614 = vunpack.c.l.b16 %v479
    %v615 = vunpack.c.l.b16 %v480
    %v616 = vunpack.c.l.b16 %v481
    %v617 = vunpack.c.l.b16 %v482
    %v618 = vunpack.c.l.b16 %v483
    %v619 = vunpack.c.l.b16 %v484
    %v620 = vunpack.c.l.b16 %v485
    %v621 = vunpack.c.l.b16 %v486
    %v622 = vunpack.c.l.b16 %v487
    %v623 = vunpack.c.l.b16 %v488
    %v624 = vunpack.c.l.b16 %v489
    %v625 = vunpack.c.l.b16 %v490
    %v626 = vunpack.c.l.b16 %v491
    %v627 = vunpack.c.l.b16 %v492
    %v628 = vunpack.c.l.b16 %v493
    %v629 = vunpack.c.l.b16 %v494
    %v630 = vunpack.c.l.b16 %v495
    %v631 = vunpack.c.l.b16 %v496
    %v632 = vunpack.c.l.b16 %v497
    %v633 = vunpack.c.l.b16 %v498
    %v634 = vunpack.c.l.b16 %v499
    %v635 = vunpack.c.l.b16 %v500
    %v636 = vpack.c.b16 %v573, %v572
    %v637 = vpack.c.b16 %v575, %v574
    %v638 = vpack.c.b16 %v577, %v576
    %v639 = vpack.c.b16 %v579, %v578
    %v640 = vpack.c.b16 %v581, %v580
    %v641 = vpack.c.b16 %v583, %v582
    %v642 = vpack.c.b16 %v585, %v584
    %v643 = vpack.c.b16 %v587, %v586
    %v644 = vpack.c.b16 %v589, %v588
    %v645 = vpack.c.b16 %v591, %v590
    %v646 = vpack.c.b16 %v593, %v592
    %v647 = vpack.c.b16 %v595, %v594
    %v648 = vpack.c.b16 %v597, %v596
    %v649 = vpack.c.b16 %v599, %v598
    %v650 = vpack.c.b16 %v601, %v600
    %v651 = vpack.c.b16 %v603, %v602
    %v652 = vpack.c.b16 %v605, %v604
    %v653 = vpack.c.b16 %v607, %v606
    %v654 = vpack.c.b16 %v609, %v608
    %v655 = vpack.c.b16 %v611, %v610
    %v656 = vpack.c.b16 %v613, %v612
    %v657 = vpack.c.b16 %v615, %v614
    %v658 = vpack.c.b16 %v617, %v616
    %v659 = vpack.c.b16 %v619, %v618
    %v660 = vpack.c.b16 %v621, %v620
    %v661 = vpack.c.b16 %v623, %v622
    %v662 = vpack.c.b16 %v625, %v624
    %v663 = vpack.c.b16 %v627, %v626
    %v664 = vpack.c.b16 %v629, %v628
    %v665 = vpack.c.b16 %v631, %v630
    %v666 = vpack.c.b16 %v633, %v632
    %v667 = vpack.c.b16 %v635, %v634
    %700 = vmatprep.subr.bf16.mxu0 0
    %701 = vmatpush1.bf16.msra.mxu0 %v636
    %702 = vmatprep.subr.bf16.mxu0 0
    %703 = vmatpush1.bf16.msra.mxu0 %v637
    %704 = vmatprep.subr.bf16.mxu0 0
    %705 = vmatpush1.bf16.msra.mxu0 %v638
    %706 = vmatprep.subr.bf16.mxu0 0
    %707 = vmatpush1.bf16.msra.mxu0 %v639
    %708 = vmatprep.subr.bf16.mxu0 0
    %709 = vmatpush1.bf16.msra.mxu0 %v640
    %710 = vmatprep.subr.bf16.mxu0 0
    %711 = vmatpush1.bf16.msra.mxu0 %v641
    %712 = vmatprep.subr.bf16.mxu0 0
    %713 = vmatpush1.bf16.msra.mxu0 %v642
    %714 = vmatprep.subr.bf16.mxu0 0
    %715 = vmatpush1.bf16.msra.mxu0 %v643
    %716 = vmatprep.subr.bf16.mxu0 0
    %717 = vmatpush1.bf16.msra.mxu0 %v644
    %718 = vmatprep.subr.bf16.mxu0 0
    %719 = vmatpush1.bf16.msra.mxu0 %v645
    %720 = vmatprep.subr.bf16.mxu0 0
    %721 = vmatpush1.bf16.msra.mxu0 %v646
    %722 = vmatprep.subr.bf16.mxu0 0
    %723 = vmatpush1.bf16.msra.mxu0 %v647
    %724 = vmatprep.subr.bf16.mxu0 0
    %725 = vmatpush1.bf16.msra.mxu0 %v648
    %726 = vmatprep.subr.bf16.mxu0 0
    %727 = vmatpush1.bf16.msra.mxu0 %v649
    %728 = vmatprep.subr.bf16.mxu0 0
    %729 = vmatpush1.bf16.msra.mxu0 %v650
    %730 = vmatprep.subr.bf16.mxu0 0
    %731 = vmatpush1.bf16.msra.mxu0 %v651
    %732 = vmatprep.mubr.bf16.mxu0 %v434
    %733 = vmatmul.mubr.bf16.gmra.mrb[0].mxu0 %v433
    %v734 = vpop.f32.mrb[0].mxu0
    %v735 = vadd.f32 %v506, %v734
    %v736 = vpop.f32.mrb[0].mxu0
    %v737 = vpop.f32.mrb[0].mxu0
    %v738 = vpop.f32.mrb[0].mxu0
    %739 = vdwg.mxu0
    %740 = vmatprep.subr.bf16.mxu0 0
    %741 = vmatpush1.bf16.msra.mxu0 %v652
    %742 = vmatprep.subr.bf16.mxu0 0
    %743 = vmatpush1.bf16.msra.mxu0 %v653
    %744 = vmatprep.subr.bf16.mxu0 0
    %745 = vmatpush1.bf16.msra.mxu0 %v654
    %746 = vmatprep.subr.bf16.mxu0 0
    %747 = vmatpush1.bf16.msra.mxu0 %v655
    %748 = vmatprep.subr.bf16.mxu0 0
    %749 = vmatpush1.bf16.msra.mxu0 %v656
    %750 = vmatprep.subr.bf16.mxu0 0
    %751 = vmatpush1.bf16.msra.mxu0 %v657
    %752 = vmatprep.subr.bf16.mxu0 0
    %753 = vmatpush1.bf16.msra.mxu0 %v658
    %754 = vmatprep.subr.bf16.mxu0 0
    %755 = vmatpush1.bf16.msra.mxu0 %v659
    %756 = vmatprep.subr.bf16.mxu0 0
    %757 = vmatpush1.bf16.msra.mxu0 %v660
    %758 = vmatprep.subr.bf16.mxu0 0
    %759 = vmatpush1.bf16.msra.mxu0 %v661
    %760 = vmatprep.subr.bf16.mxu0 0
    %761 = vmatpush1.bf16.msra.mxu0 %v662
    %762 = vmatprep.subr.bf16.mxu0 0
    %763 = vmatpush1.bf16.msra.mxu0 %v663
    %764 = vmatprep.subr.bf16.mxu0 0
    %765 = vmatpush1.bf16.msra.mxu0 %v664
    %766 = vmatprep.subr.bf16.mxu0 0
    %767 = vmatpush1.bf16.msra.mxu0 %v665
    %768 = vmatprep.subr.bf16.mxu0 0
    %769 = vmatpush1.bf16.msra.mxu0 %v666
    %770 = vmatprep.subr.bf16.mxu0 0
    %771 = vmatpush1.bf16.msra.mxu0 %v667
    %772 = vmatprep.mubr.bf16.mxu0 %v436
    %773 = vmatmul.mubr.bf16.gmra.mrb[0].mxu0 %v435
    %v774 = vpop.f32.mrb[0].mxu0
    %v775 = vadd.f32 %v735, %v774
    %v776 = vpop.f32.mrb[0].mxu0
    %v777 = vpop.f32.mrb[0].mxu0
    %v778 = vpop.f32.mrb[0].mxu0
    %779 = vdwg.mxu0
    %v780 = vmax.f32 %v775, 0.0
    %v781 = vpack.c.bf16 %v780, %v780
    %v782 = vld [vmem:[%s7] sm:$0xf]
    %v783 = vld [vmem:[%s7 + $0x4] sm:$0xf]
    %v784 = vld [vmem:[%s7 + $0x8] sm:$0xf]
    %v785 = vld [vmem:[%s7 + $0xc] sm:$0xf]
    %v786 = vld [vmem:[%s7 + $0x10] sm:$0xf]
    %v787 = vld [vmem:[%s7 + $0x14] sm:$0xf]
    %v788 = vld [vmem:[%s7 + $0x18] sm:$0xf]
    %v789 = vld [vmem:[%s7 + $0x1c] sm:$0xf]
    %v790 = vld [vmem:[%s7 + $0x20] sm:$0xf]
    %v791 = vld [vmem:[%s7 + $0x24] sm:$0xf]
    %v792 = vld [vmem:[%s7 + $0x28] sm:$0xf]
    %v793 = vld [vmem:[%s7 + $0x2c] sm:$0xf]
    %v794 = vld [vmem:[%s7 + $0x30] sm:$0xf]
    %v795 = vld [vmem:[%s7 + $0x34] sm:$0xf]
    %v796 = vld [vmem:[%s7 + $0x38] sm:$0xf]
    %v797 = vld [vmem:[%s7 + $0x3c] sm:$0xf]
    %v798 = vld [vmem:[%s8] sm:$0x1]
    %v800 = vlaneseq
    %v801 = vshrl.u32 %v800, 7
    %v802 = vsub.s32 0, %v801
    %v803 = vrot.slane %v798, %v802
    %v821 = vunpack.c.l.b16 %v782
    %v822 = vunpack.c.l.b16 %v783
    %v823 = vunpack.c.l.b16 %v784
    %v824 = vunpack.c.l.b16 %v785
    %v825 = vunpack.c.l.b16 %v786
    %v826 = vunpack.c.l.b16 %v787
    %v827 = vunpack.c.l.b16 %v788
    %v828 = vunpack.c.l.b16 %v789
    %v829 = vunpack.c.l.b16 %v790
    %v830 = vunpack.c.l.b16 %v791
    %v831 = vunpack.c.l.b16 %v792
    %v832 = vunpack.c.l.b16 %v793
    %v833 = vunpack.c.l.b16 %v794
    %v834 = vunpack.c.l.b16 %v795
    %v835 = vunpack.c.l.b16 %v796
    %v836 = vunpack.c.l.b16 %v797
    %v837 = vpack.c.b16 %v822, %v821
    %v838 = vpack.c.b16 %v824, %v823
    %v839 = vpack.c.b16 %v826, %v825
    %v840 = vpack.c.b16 %v828, %v827
    %v841 = vpack.c.b16 %v830, %v829
    %v842 = vpack.c.b16 %v832, %v831
    %v843 = vpack.c.b16 %v834, %v833
    %v844 = vpack.c.b16 %v836, %v835
    %853 = vmatprep.subr.bf16.mxu0 0
    %854 = vmatpush1.bf16.msra.mxu0 %v837
    %855 = vmatprep.subr.bf16.mxu0 0
    %856 = vmatpush1.bf16.msra.mxu0 %v838
    %857 = vmatprep.subr.bf16.mxu0 0
    %858 = vmatpush1.bf16.msra.mxu0 %v839
    %859 = vmatprep.subr.bf16.mxu0 0
    %860 = vmatpush1.bf16.msra.mxu0 %v840
    %861 = vmatprep.subr.bf16.mxu0 0
    %862 = vmatpush1.bf16.msra.mxu0 %v841
    %863 = vmatprep.subr.bf16.mxu0 0
    %864 = vmatpush1.bf16.msra.mxu0 %v842
    %865 = vmatprep.subr.bf16.mxu0 0
    %866 = vmatpush1.bf16.msra.mxu0 %v843
    %867 = vmatprep.subr.bf16.mxu0 0
    %868 = vmatpush1.bf16.msra.mxu0 %v844
    %869 = vmatprep.subr.bf16.mxu0 0
    %870 = vmatpush1.bf16.msra.mxu0 0
    %871 = vmatprep.subr.bf16.mxu0 0
    %872 = vmatpush1.bf16.msra.mxu0 0
    %873 = vmatprep.subr.bf16.mxu0 0
    %874 = vmatpush1.bf16.msra.mxu0 0
    %875 = vmatprep.subr.bf16.mxu0 0
    %876 = vmatpush1.bf16.msra.mxu0 0
    %877 = vmatprep.subr.bf16.mxu0 0
    %878 = vmatpush1.bf16.msra.mxu0 0
    %879 = vmatprep.subr.bf16.mxu0 0
    %880 = vmatpush1.bf16.msra.mxu0 0
    %881 = vmatprep.subr.bf16.mxu0 0
    %882 = vmatpush1.bf16.msra.mxu0 0
    %883 = vmatprep.subr.bf16.mxu0 0
    %884 = vmatpush1.bf16.msra.mxu0 0
    %885 = vmatprep.mubr.bf16.mxu0 0
    %886 = vmatmul.mubr.bf16.gmra.mrb[0].mxu0 %v781
    %v887 = vpop.f32.mrb[0].mxu0
    %v888 = vadd.f32 %v803, %v887
    %v889 = vpop.f32.mrb[0].mxu0
    %v890 = vpop.f32.mrb[0].mxu0
    %v891 = vpop.f32.mrb[0].mxu0
    %892 = vdwg.mxu0
    %vm893 = vcmask 156672
    %894 = vst.msk [vmem:[#allocation7] sm:$0x3] %vm893, %v888
    // Predicated region
    $region46: #{trainable_mlp_forward.1} parent=1 // pred_check
      _
    $region47: #{trainable_mlp_forward.1} parent=1 // pred_check_branch
      %896 = sbr.rel (0) target = $region49
    $region48: #{trainable_mlp_forward.1} parent=1 // pred_region
      %s898 = ssub.s32 32, 32
      %899 = vsyncadd [#allocation4], %s898
      %s901 = sshll.u32 [#allocation7], 4
      %s902 = int_to_ptr.vmem [resolvable:$true] %s901
      %904 = dma.vmem_to_hbm [thread:$0]  %s902, 32, %s9, [#allocation4]
    $region49: #{trainable_mlp_forward.1} parent=1 // pred_fallthru
      _
    // Predicated region
    $region50: #{trainable_mlp_forward.1} parent=1 // pred_check
      _
    $region51: #{trainable_mlp_forward.1} parent=1 // pred_check_branch
      %906 = sbr.rel (0) target = $region53
    $region52: #{trainable_mlp_forward.1} parent=1 // pred_region
      %907 = dma.done [#allocation4], 32
    $region53: #{trainable_mlp_forward.1} parent=1 // pred_fallthru
      _
    %908 = vsyncpa [#allocation3], 1
    %909 = vsyncpa [#allocation6], 1
    %910 = vsyncpa [#allocation4], 1

</llo_original>
